<compile_context>
chip_gen: v6e
topology: v6e:2x2x1
jax: 0.10.0
libtpu: 0.0.40
codegen_flags: <defaults>
</compile_context>

<pallas_src>
import jax
import jax.numpy as jnp
from jax.experimental import pallas as pl
from jax.experimental.pallas import tpu as pltpu


def mlp_attention_kernel(q_ref, k_ref, val_ref, vl_ref, wkv_ref, wqv_ref, out_ref):
    """Batched-block MLP attention.

    q_ref  : (Bt, Lq, D)   queries  (bf16)
    k_ref  : (Bt, Lk, D)   keys     (bf16)
    val_ref: (Bt, Lk, Dv)  values   (bf16)
    vl_ref : (Bt, 1, 1)    int32 valid key lengths
    wkv_ref: (1, D) f32    folded weight W_k^T @ v (applied to the *query*, as in PyTorch)
    wqv_ref: (1, D) f32    folded weight W_q^T @ v (applied to the *key*)
    out_ref: (Bt, Lq, Dv)
    """
    q = q_ref[...].astype(jnp.float32)          # upcast once; score math stays f32
    k = k_ref[...].astype(jnp.float32)
    wkv = wkv_ref[...]                          # (1, D) -> broadcasts over (Bt, Lq, D)
    wqv = wqv_ref[...]

    # Additive-attention scores via the exact rank-1 decomposition; lane reductions on
    # the VPU/XLU keep the MXU (and its result FIFO) out of this N=1 path.
    qs = jnp.sum(q * wkv, axis=-1, keepdims=True)          # (Bt, Lq, 1)
    ks = jnp.sum(k * wqv, axis=-1, keepdims=True)          # (Bt, Lk, 1)
    scores = qs + jnp.transpose(ks, (0, 2, 1))             # (Bt, Lq, Lk) f32

    bt, _, lk = scores.shape
    valid = vl_ref[...]                                    # (Bt, 1, 1) int32
    # Build the mask at (Bt, 1, Lk) and let jnp.where broadcast it over Lq.
    col = jax.lax.broadcasted_iota(jnp.int32, (bt, 1, lk), 2)
    masked = jnp.where(col >= valid, jnp.float32(-1000000.0), scores)

    # Masked softmax over the key axis (matches nn.Softmax(dim=-1) after SequenceMask).
    # NOTE: if valid_length[b] == 0 every score is -1e6 and softmax is uniform over the
    # masked keys — same behaviour as the PyTorch reference (intentional).
    m = jnp.max(masked, axis=-1, keepdims=True)
    e = jnp.exp(masked - m)
    denom = jnp.sum(e, axis=-1, keepdims=True)
    attn = e * pl.reciprocal(denom, approx=True)           # EUP reciprocal + one VPU mul

    # TODO(synk): nn.Dropout on the attention weights is identity in eval mode; no RNG dropout.

    out_ref[...] = jnp.einsum(
        "bqk,bkd->bqd", attn.astype(val_ref.dtype), val_ref[...],
        preferred_element_type=jnp.float32).astype(out_ref.dtype)


def _pick_block_b(B, Lq, Lk, D, Dv, in_bytes, out_bytes, vmem_budget_bytes):
    """Largest divisor of B that (a) leaves >= 2 grid steps when B >= 2 (v7x megacore +
    DMA overlap) and (b) fits the VMEM budget: double-buffered q/k/v/out streams plus the
    transient f32 scores/exp slab (x4 headroom for temporaries)."""
    def fits(bb):
        streams = 2 * bb * ((Lq * D + Lk * D + Lk * Dv) * in_bytes + Lq * Dv * out_bytes)
        transient = 4 * bb * Lq * Lk * 4
        return streams + transient <= vmem_budget_bytes

    divisors = [d for d in range(1, B + 1) if B % d == 0]
    cands = [d for d in divisors if B // d >= 2] or divisors
    best = 1
    for d in sorted(cands):
        if fits(d):
            best = d
    return best


def mlp_attention(query, key, value, valid_length, wk_t, wq_t, v_t, *,
                  block_b=None, input_dtype=jnp.bfloat16,
                  vmem_limit_bytes=48 * 1024 * 1024):
    """query: (B, Lq, D), key: (B, Lk, D), value: (B, Lk, Dv), valid_length: (B,) int.

    wk_t / wq_t are the nn.Linear weights pre-transposed to (D, U); v_t is (U, 1).
    """
    B, Lq, D = query.shape
    _, Lk, _ = key.shape
    Dv = value.shape[-1]
    out_dtype = query.dtype

    # One-time weight prep: fold the scalar scoring vector v into the projections.
    # Exact because v is bias-free: v.(W_k q + W_q k) = q.(W_k^T v) + k.(W_q^T v).
    wkv = (wk_t @ v_t).reshape(1, D).astype(jnp.float32)
    wqv = (wq_t @ v_t).reshape(1, D).astype(jnp.float32)

    # Bandwidth-bound kernel: halve the HBM bytes for the big streams. Score/softmax math
    # is still f32 in-kernel; PV accumulation uses preferred_element_type=f32.
    q_in = query.astype(input_dtype)
    k_in = key.astype(input_dtype)
    v_in = value.astype(input_dtype)

    if block_b is None:
        in_bytes = jnp.dtype(input_dtype).itemsize
        out_bytes = jnp.dtype(out_dtype).itemsize
        # Budget well under vmem_limit (and under v7x's 64 MiB physical) for headroom.
        budget = min(vmem_limit_bytes, 32 * 1024 * 1024)
        block_b = _pick_block_b(B, Lq, Lk, D, Dv, in_bytes, out_bytes, budget)
    assert B % block_b == 0, "B must be divisible by block_b"
    grid = (B // block_b,)

    vl = valid_length.astype(jnp.int32).reshape(B, 1, 1)

    # TODO(synk): for production shapes (large Lq/Lk/Dv): (1) make the output store
    # lane-dense (pad Dv to a multiple of 128, or emit a flattened (B, Lq*Dv) slab) —
    # Dv=16 here means masked vst on 16/128 lanes; (2) tile Lq as a second 'parallel'
    # grid axis and Lk as an innermost 'arbitrary' axis with an online softmax so the
    # f32 scores slab stays bounded (v7x has only 64 MiB VMEM); (3) move valid_length to
    # scalar prefetch (PrefetchScalarGridSpec) and skip fully-masked key tiles; (4) bump
    # key/value specs to pipeline_mode=pl.Buffered(3) if DMA is exposed.
    return pl.pallas_call(
        mlp_attention_kernel,
        out_shape=jax.ShapeDtypeStruct((B, Lq, Dv), out_dtype),
        grid_spec=pl.GridSpec(
            grid=grid,
            in_specs=[
                pl.BlockSpec((block_b, Lq, D), lambda b: (b, 0, 0)),    # query (bf16)
                pl.BlockSpec((block_b, Lk, D), lambda b: (b, 0, 0)),    # key   (bf16)
                pl.BlockSpec((block_b, Lk, Dv), lambda b: (b, 0, 0)),   # value (bf16)
                pl.BlockSpec((block_b, 1, 1), lambda b: (b, 0, 0)),     # valid lengths
                pl.BlockSpec((1, D), lambda b: (0, 0)),                 # W_k^T v (folded)
                pl.BlockSpec((1, D), lambda b: (0, 0)),                 # W_q^T v (folded)
            ],
            out_specs=pl.BlockSpec((block_b, Lq, Dv), lambda b: (b, 0, 0)),
        ),
        compiler_params=pltpu.CompilerParams(
            dimension_semantics=("parallel",),
            vmem_limit_bytes=vmem_limit_bytes,
        ),
    )(q_in, k_in, v_in, vl, wkv, wqv)


def mlp_attention_reference(query, key, value, valid_length, wk_t, wq_t, v_t):
    """Pure-JAX reference mirroring the PyTorch forward literally (4-D features tensor)."""
    qt = query @ wk_t                                   # (B, Lq, U)
    kt = key @ wq_t                                     # (B, Lk, U)
    features = qt[:, :, None, :] + kt[:, None, :, :]    # (B, Lq, Lk, U)
    scores = jnp.squeeze(features @ v_t, axis=-1)       # (B, Lq, Lk)
    Lk = scores.shape[-1]
    mask = jnp.arange(Lk)[None, None, :] >= valid_length[:, None, None]
    scores = jnp.where(mask, -1000000.0, scores)
    attn = jax.nn.softmax(scores, axis=-1)
    return attn @ value                                 # (B, Lq, Dv)


if __name__ == "__main__":
    # Small shapes consistent with the module: MLPAttention(units, ipt_dim, dropout)
    B, Lq, Lk = 2, 8, 8
    ipt_dim, units, Dv = 32, 32, 16

    key0 = jax.random.PRNGKey(0)
    k_q, k_k, k_v, k_wk, k_wq, k_vw = jax.random.split(key0, 6)

    query = jax.random.normal(k_q, (B, Lq, ipt_dim), dtype=jnp.float32)
    key_ = jax.random.normal(k_k, (B, Lk, ipt_dim), dtype=jnp.float32)
    value = jax.random.normal(k_v, (B, Lk, Dv), dtype=jnp.float32)
    valid_length = jnp.array([5, 8], dtype=jnp.int32)   # per-batch valid key positions

    # Deterministic parameter init (shapes from nn.Linear in __init__), passed pre-transposed.
    scale = 1.0 / jnp.sqrt(jnp.float32(ipt_dim))
    wk_t = jax.random.uniform(k_wk, (ipt_dim, units), jnp.float32, -scale, scale)  # W_k.weight.T
    wq_t = jax.random.uniform(k_wq, (ipt_dim, units), jnp.float32, -scale, scale)  # W_q.weight.T
    v_scale = 1.0 / jnp.sqrt(jnp.float32(units))
    v_t = jax.random.uniform(k_vw, (units, 1), jnp.float32, -v_scale, v_scale)     # v.weight.T

    out = mlp_attention(query, key_, value, valid_length, wk_t, wq_t, v_t)
    out = jax.block_until_ready(out)
    assert out.shape == (B, Lq, Dv)

    # Reference evaluated on the same bf16-quantised inputs the kernel streams from HBM,
    # so the comparison isolates kernel math (f32 softmax, folded v, approx reciprocal,
    # bf16 attn into the MXU) from the intentional bf16 input quantisation.
    q_q = query.astype(jnp.bfloat16).astype(jnp.float32)
    k_q_ = key_.astype(jnp.bfloat16).astype(jnp.float32)
    v_q = value.astype(jnp.bfloat16).astype(jnp.float32)
    ref = mlp_attention_reference(q_q, k_q_, v_q, valid_length, wk_t, wq_t, v_t)
    assert jnp.allclose(out, ref, atol=2e-2, rtol=2e-2), "Pallas kernel mismatch vs reference"

    print("KERNEL_OK")
</pallas_src>

<mosaic_0001>
module attributes {stable_mosaic.version = 11 : i64} {
  func.func @mlp_attention_kernel(%arg0: i32, %arg1: memref<1x8x32xbf16, #tpu.memory_space<vmem>>, %arg2: memref<1x8x32xbf16, #tpu.memory_space<vmem>>, %arg3: memref<1x8x16xbf16, #tpu.memory_space<vmem>>, %arg4: memref<1x1x1xi32, #tpu.memory_space<vmem>>, %arg5: memref<1x32xf32, #tpu.memory_space<vmem>>, %arg6: memref<1x32xf32, #tpu.memory_space<vmem>>, %arg7: memref<1x8x16xf32, #tpu.memory_space<vmem>>) attributes {dimension_semantics = [#tpu.dimension_semantics<parallel>], iteration_bounds = array<i64: 2>, scalar_prefetch = 0 : i64, scratch_operands = 0 : i64, tpu.core_type = #tpu.core_type<tc>, window_params = [{transform_indices = @transform_0, window_bounds = array<i64: 1, 8, 32>}, {transform_indices = @transform_1, window_bounds = array<i64: 1, 8, 32>}, {transform_indices = @transform_2, window_bounds = array<i64: 1, 8, 16>}, {transform_indices = @transform_3, window_bounds = array<i64: 1, 1, 1>}, {pipeline_mode = #tpu.pipeline_mode<synchronous>, transform_indices = @transform_4, window_bounds = array<i64: 1, 32>}, {pipeline_mode = #tpu.pipeline_mode<synchronous>, transform_indices = @transform_5, window_bounds = array<i64: 1, 32>}, {transform_indices = @transform_6, window_bounds = array<i64: 1, 8, 16>}]} {
    %c0 = arith.constant 0 : index
    %c0_0 = arith.constant 0 : index
    %c0_1 = arith.constant 0 : index
    %0 = vector.load %arg1[%c0, %c0_0, %c0_1] : memref<1x8x32xbf16, #tpu.memory_space<vmem>>, vector<1x8x32xbf16>
    %1 = arith.extf %0 : vector<1x8x32xbf16> to vector<1x8x32xf32>
    %c0_2 = arith.constant 0 : index
    %c0_3 = arith.constant 0 : index
    %c0_4 = arith.constant 0 : index
    %2 = vector.load %arg2[%c0_2, %c0_3, %c0_4] : memref<1x8x32xbf16, #tpu.memory_space<vmem>>, vector<1x8x32xbf16>
    %3 = arith.extf %2 : vector<1x8x32xbf16> to vector<1x8x32xf32>
    %c0_5 = arith.constant 0 : index
    %c0_6 = arith.constant 0 : index
    %4 = vector.load %arg5[%c0_5, %c0_6] : memref<1x32xf32, #tpu.memory_space<vmem>>, vector<1x32xf32>
    %c0_7 = arith.constant 0 : index
    %c0_8 = arith.constant 0 : index
    %5 = vector.load %arg6[%c0_7, %c0_8] : memref<1x32xf32, #tpu.memory_space<vmem>>, vector<1x32xf32>
    %6 = vector.shape_cast %4 : vector<1x32xf32> to vector<1x1x32xf32>
    %7 = vector.broadcast %6 : vector<1x1x32xf32> to vector<1x8x32xf32>
    %8 = arith.mulf %1, %7 : vector<1x8x32xf32>
    %cst = arith.constant dense<0.000000e+00> : vector<1x8xf32>
    %9 = vector.multi_reduction <add>, %8, %cst [2] : vector<1x8x32xf32> to vector<1x8xf32>
    %10 = vector.shape_cast %9 : vector<1x8xf32> to vector<1x8x1xf32>
    %11 = vector.shape_cast %5 : vector<1x32xf32> to vector<1x1x32xf32>
    %12 = vector.broadcast %11 : vector<1x1x32xf32> to vector<1x8x32xf32>
    %13 = arith.mulf %3, %12 : vector<1x8x32xf32>
    %cst_9 = arith.constant dense<0.000000e+00> : vector<1x8xf32>
    %14 = vector.multi_reduction <add>, %13, %cst_9 [2] : vector<1x8x32xf32> to vector<1x8xf32>
    %15 = vector.shape_cast %14 : vector<1x8xf32> to vector<1x8x1xf32>
    %16 = tpu.transpose %15, [0, 2, 1] : vector<1x8x1xf32> -> vector<1x1x8xf32>
    %17 = vector.broadcast %10 : vector<1x8x1xf32> to vector<1x8x8xf32>
    %18 = vector.broadcast %16 : vector<1x1x8xf32> to vector<1x8x8xf32>
    %19 = arith.addf %17, %18 : vector<1x8x8xf32>
    %c0_10 = arith.constant 0 : index
    %c0_11 = arith.constant 0 : index
    %c0_12 = arith.constant 0 : index
    %20 = vector.load %arg4[%c0_10, %c0_11, %c0_12] : memref<1x1x1xi32, #tpu.memory_space<vmem>>, vector<1x1x1xi32>
    %21 = tpu.iota {dimensions = array<i32: 2>} : vector<1x1x8xi32>
    %22 = vector.broadcast %20 : vector<1x1x1xi32> to vector<1x1x8xi32>
    %23 = arith.cmpi sge, %21, %22 : vector<1x1x8xi32>
    %cst_13 = arith.constant -1.000000e+06 : f32
    %24 = vector.shape_cast %23 : vector<1x1x8xi1> to vector<1x1x8xi1>
    %25 = vector.broadcast %24 : vector<1x1x8xi1> to vector<1x8x8xi1>
    %26 = vector.broadcast %cst_13 : f32 to vector<1x8x8xf32>
    %27 = arith.select %25, %26, %19 : vector<1x8x8xi1>, vector<1x8x8xf32>
    %cst_14 = arith.constant dense<0xFF800000> : vector<1x8xf32>
    %28 = vector.multi_reduction <maximumf>, %27, %cst_14 [2] : vector<1x8x8xf32> to vector<1x8xf32>
    %29 = vector.shape_cast %28 : vector<1x8xf32> to vector<1x8x1xf32>
    %30 = vector.broadcast %29 : vector<1x8x1xf32> to vector<1x8x8xf32>
    %31 = arith.subf %27, %30 : vector<1x8x8xf32>
    %32 = math.exp %31 : vector<1x8x8xf32>
    %cst_15 = arith.constant dense<0.000000e+00> : vector<1x8xf32>
    %33 = vector.multi_reduction <add>, %32, %cst_15 [2] : vector<1x8x8xf32> to vector<1x8xf32>
    %34 = vector.shape_cast %33 : vector<1x8xf32> to vector<1x8x1xf32>
    %35 = tpu.reciprocal %34 {approx = true} : vector<1x8x1xf32> -> vector<1x8x1xf32>
    %36 = vector.broadcast %35 : vector<1x8x1xf32> to vector<1x8x8xf32>
    %37 = arith.mulf %32, %36 : vector<1x8x8xf32>
    %38 = arith.truncf %37 : vector<1x8x8xf32> to vector<1x8x8xbf16>
    %c0_16 = arith.constant 0 : index
    %c0_17 = arith.constant 0 : index
    %c0_18 = arith.constant 0 : index
    %39 = vector.load %arg3[%c0_16, %c0_17, %c0_18] : memref<1x8x16xbf16, #tpu.memory_space<vmem>>, vector<1x8x16xbf16>
    "tpu.trace_start"() <{level = 10 : i32, message = "bqk,bkd->bqd"}> : () -> ()
    %cst_19 = arith.constant dense<0.000000e+00> : vector<1x8x16xf32>
    %40 = tpu.matmul %38, %39, %cst_19 {dimension_numbers = #tpu.dot_dimension_numbers<[2], [1], [1], [2], [0, 0, 0, 1, 1, 2], [0], [0]>} : vector<1x8x8xbf16>, vector<1x8x16xbf16>, vector<1x8x16xf32> -> vector<1x8x16xf32>
    "tpu.trace_stop"() : () -> ()
    %c0_20 = arith.constant 0 : index
    %c0_21 = arith.constant 0 : index
    %c0_22 = arith.constant 0 : index
    %41 = vector.load %arg7[%c0_20, %c0_21, %c0_22] : memref<1x8x16xf32, #tpu.memory_space<vmem>>, vector<1x8x16xf32>
    tpu.vector_store %arg7[%c0_20, %c0_21, %c0_22], %40 {strides = array<i32>} : memref<1x8x16xf32, #tpu.memory_space<vmem>>, vector<1x8x16xf32>,
    return
  }
  func.func @transform_0(%arg0: i32) -> (i32, i32, i32) {
    %c0_i32 = arith.constant 0 : i32
    %c0_i32_0 = arith.constant 0 : i32
    %c0_i32_1 = arith.constant 0 : i32
    return %arg0, %c0_i32, %c0_i32_0 : i32, i32, i32
  }
  func.func @transform_1(%arg0: i32) -> (i32, i32, i32) {
    %c0_i32 = arith.constant 0 : i32
    %c0_i32_0 = arith.constant 0 : i32
    %c0_i32_1 = arith.constant 0 : i32
    return %arg0, %c0_i32, %c0_i32_0 : i32, i32, i32
  }
  func.func @transform_2(%arg0: i32) -> (i32, i32, i32) {
    %c0_i32 = arith.constant 0 : i32
    %c0_i32_0 = arith.constant 0 : i32
    %c0_i32_1 = arith.constant 0 : i32
    return %arg0, %c0_i32, %c0_i32_0 : i32, i32, i32
  }
  func.func @transform_3(%arg0: i32) -> (i32, i32, i32) {
    %c0_i32 = arith.constant 0 : i32
    %c0_i32_0 = arith.constant 0 : i32
    %c0_i32_1 = arith.constant 0 : i32
    return %arg0, %c0_i32, %c0_i32_0 : i32, i32, i32
  }
  func.func @transform_4(%arg0: i32) -> (i32, i32) {
    %c0_i32 = arith.constant 0 : i32
    %c0_i32_0 = arith.constant 0 : i32
    %c0_i32_1 = arith.constant 0 : i32
    return %c0_i32, %c0_i32_0 : i32, i32
  }
  func.func @transform_5(%arg0: i32) -> (i32, i32) {
    %c0_i32 = arith.constant 0 : i32
    %c0_i32_0 = arith.constant 0 : i32
    %c0_i32_1 = arith.constant 0 : i32
    return %c0_i32, %c0_i32_0 : i32, i32
  }
  func.func @transform_6(%arg0: i32) -> (i32, i32, i32) {
    %c0_i32 = arith.constant 0 : i32
    %c0_i32_0 = arith.constant 0 : i32
    %c0_i32_1 = arith.constant 0 : i32
    return %arg0, %c0_i32, %c0_i32_0 : i32, i32, i32
  }
}

</mosaic_0001>

<llo_original>
// kernel: tpu_custom_call.1
$region0: #{tpu_custom_call.1}
  #allocation0 [shape = 'u32[]', space=smem, size = 0x4, offset = 0x4, fixed_abs, tag = 'smem constant byte address 0x4 - core index']
  #allocation1 [shape = 'u32[144,128]{1,0:T(1,128)}', space=vmem, size = 0x12000, scoped, tag = 'internal scratch']
  %s0 = inlined_call_operand.hbm [shape: bf16[2,8,32], index: 0, kind: input, shape index: {}]
  %s1 = inlined_call_operand.hbm [shape: bf16[2,8,32], index: 1, kind: input, shape index: {}]
  %s2 = inlined_call_operand.hbm [shape: bf16[2,8,16], index: 2, kind: input, shape index: {}]
  %s3 = inlined_call_operand.vmem [shape: s32[2,1,1], index: 3, kind: input, shape index: {}]
  %s4 = inlined_call_operand.vmem [shape: f32[1,32], index: 4, kind: input, shape index: {}]
  %s5 = inlined_call_operand.vmem [shape: f32[1,32], index: 5, kind: input, shape index: {}]
  %s6 = inlined_call_operand.hbm [shape: f32[2,8,16], index: 6, kind: output, shape index: {}]
  %s7 = sld [smem:[#allocation0]]
  $region69: #{tpu_custom_call.1} parent=0
    _
  %s9 = ssub.s32 1, %s7
  %s10 = scalar_select 0, %s9, %s7
  $region1: #{tpu_custom_call.1} parent=0
    #allocation2 [shape = 'u8[4096]{0}', space=vmem, size = 0x1000, scoped, tag = 'input window, operand 0']
    #allocation3 [shape = 's32[2]{0}', space=sflag, size = 0x8, scoped, tag = 'scoped memory for tpu_custom_call.1']
    #allocation4 [shape = 's32[2]{0}', space=sflag, size = 0x8, scoped, tag = 'scoped memory for tpu_custom_call.1']
    #allocation5 [shape = 'u8[4096]{0}', space=vmem, size = 0x1000, scoped, tag = 'input window, operand 1']
    #allocation6 [shape = 's32[2]{0}', space=sflag, size = 0x8, scoped, tag = 'scoped memory for tpu_custom_call.1']
    #allocation7 [shape = 'u8[4096]{0}', space=vmem, size = 0x1000, scoped, tag = 'input window, operand 2']
    #allocation8 [shape = 'u8[8192]{0}', space=vmem, size = 0x2000, scoped, tag = 'output window, operand 0']
    %11 = vsyncpa [#allocation3], 0
    %s12 = scalar_lea.sflag [#allocation3], 1
    %13 = vsyncpa %s12, 0
    %14 = vsyncpa [#allocation6], 0
    %s15 = scalar_lea.sflag [#allocation6], 1
    %16 = vsyncpa %s15, 0
    %17 = vsyncpa [#allocation4], 0
    %s18 = scalar_lea.sflag [#allocation4], 1
    %19 = vsyncpa %s18, 0
    loop: start=0, step=1, limit=4
    $region2: #{tpu_custom_call.1} parent=1 // loop_pre_header
      _
    $region3: #{tpu_custom_call.1} parent=1 // loop_header
      %s21 = sphi 0, %s25
      %p22 = scmp.ge.s32.totalorder %s21, 4
      %s31 = sphi 0, %s33
      %s34 = sphi 0, %s31
      %s35 = sphi 0, %s34
      %s51 = sphi 0, %s35
      %s57 = sphi 0, %s59
      %s60 = sphi 0, %s57
      %s61 = sphi 0, %s60
      %s77 = sphi 0, %s61
      %s83 = sphi 0, %s85
      %s86 = sphi 0, %s83
      %s87 = sphi 0, %s86
      %s103 = sphi 0, %s87
      %s109 = sphi 0, %s111
      %s112 = sphi 0, %s109
      %s113 = sphi 0, %s112
      %s129 = sphi 0, %s113
      %s133 = sphi 0, %s133
      %s135 = sphi 0, %s133
      %s136 = sphi 0, %s135
      %s150 = sphi 0, %s136
      %s154 = sphi 0, %s154
      %s156 = sphi 0, %s154
      %s157 = sphi 0, %s156
      %s171 = sphi 0, %s157
      %s177 = sphi 0, %s179
      %s180 = sphi 0, %s177
      %s181 = sphi 0, %s180
      %s197 = sphi 0, %s181
    $region4: #{tpu_custom_call.1} parent=1 // loop_header_branch
      %24 = sbr.rel (%p22) target = $region8
    $region5: #{tpu_custom_call.1} parent=1 // loop_body
      %s26 = ssub.s32 %s21, 1
      %s27 = ssub.s32 %s21, 2
      %s28 = sadd.s32 %s21, 1
      %s29 = ssub.s32 %s21, %s28
      %p30 = scmp.eq.s32.totalorder %s29, 0
      %s32 = sadd.s32 %s31, 1
      %s33 = scalar_select %p30, %s31, %s32
      %p36 = pneg %p30
      %p37 = scmp.eq.s32.totalorder %s21, 1
      %p38 = por %p36, %p37
      %p39 = scmp.ne.s32.totalorder %s31, %s34
      %p40 = scmp.eq.s32.totalorder %s21, 0
      %p41 = por %p39, %p40
      %p42 = scmp.ne.s32.totalorder %s31, %s34
      %p43 = scmp.eq.s32.totalorder %s26, 1
      %p44 = por %p42, %p43
      %p45 = scmp.ne.s32.totalorder %s34, %s35
      %p46 = scmp.eq.s32.totalorder %s26, 0
      %p47 = por %p45, %p46
      %p48 = scmp.ne.s32.totalorder %s34, %s35
      %p49 = scmp.eq.s32.totalorder %s27, 1
      %p50 = por %p48, %p49
      %p52 = scmp.ne.s32.totalorder %s35, %s51
      %p53 = scmp.eq.s32.totalorder %s27, 0
      %p54 = por %p52, %p53
      %s55 = ssub.s32 %s21, %s28
      %p56 = scmp.eq.s32.totalorder %s55, 0
      %s58 = sadd.s32 %s57, 1
      %s59 = scalar_select %p56, %s57, %s58
      %p62 = pneg %p56
      %p63 = scmp.eq.s32.totalorder %s21, 1
      %p64 = por %p62, %p63
      %p65 = scmp.ne.s32.totalorder %s57, %s60
      %p66 = scmp.eq.s32.totalorder %s21, 0
      %p67 = por %p65, %p66
      %p68 = scmp.ne.s32.totalorder %s57, %s60
      %p69 = scmp.eq.s32.totalorder %s26, 1
      %p70 = por %p68, %p69
      %p71 = scmp.ne.s32.totalorder %s60, %s61
      %p72 = scmp.eq.s32.totalorder %s26, 0
      %p73 = por %p71, %p72
      %p74 = scmp.ne.s32.totalorder %s60, %s61
      %p75 = scmp.eq.s32.totalorder %s27, 1
      %p76 = por %p74, %p75
      %p78 = scmp.ne.s32.totalorder %s61, %s77
      %p79 = scmp.eq.s32.totalorder %s27, 0
      %p80 = por %p78, %p79
      %s81 = ssub.s32 %s21, %s28
      %p82 = scmp.eq.s32.totalorder %s81, 0
      %s84 = sadd.s32 %s83, 1
      %s85 = scalar_select %p82, %s83, %s84
      %p88 = pneg %p82
      %p89 = scmp.eq.s32.totalorder %s21, 1
      %p90 = por %p88, %p89
      %p91 = scmp.ne.s32.totalorder %s83, %s86
      %p92 = scmp.eq.s32.totalorder %s21, 0
      %p93 = por %p91, %p92
      %p94 = scmp.ne.s32.totalorder %s83, %s86
      %p95 = scmp.eq.s32.totalorder %s26, 1
      %p96 = por %p94, %p95
      %p97 = scmp.ne.s32.totalorder %s86, %s87
      %p98 = scmp.eq.s32.totalorder %s26, 0
      %p99 = por %p97, %p98
      %p100 = scmp.ne.s32.totalorder %s86, %s87
      %p101 = scmp.eq.s32.totalorder %s27, 1
      %p102 = por %p100, %p101
      %p104 = scmp.ne.s32.totalorder %s87, %s103
      %p105 = scmp.eq.s32.totalorder %s27, 0
      %p106 = por %p104, %p105
      %s107 = ssub.s32 %s21, %s28
      %p108 = scmp.eq.s32.totalorder %s107, 0
      %s110 = sadd.s32 %s109, 1
      %s111 = scalar_select %p108, %s109, %s110
      %p114 = pneg %p108
      %p115 = scmp.eq.s32.totalorder %s21, 1
      %p116 = por %p114, %p115
      %p117 = scmp.ne.s32.totalorder %s109, %s112
      %p118 = scmp.eq.s32.totalorder %s21, 0
      %p119 = por %p117, %p118
      %p120 = scmp.ne.s32.totalorder %s109, %s112
      %p121 = scmp.eq.s32.totalorder %s26, 1
      %p122 = por %p120, %p121
      %p123 = scmp.ne.s32.totalorder %s112, %s113
      %p124 = scmp.eq.s32.totalorder %s26, 0
      %p125 = por %p123, %p124
      %p126 = scmp.ne.s32.totalorder %s112, %s113
      %p127 = scmp.eq.s32.totalorder %s27, 1
      %p128 = por %p126, %p127
      %p130 = scmp.ne.s32.totalorder %s113, %s129
      %p131 = scmp.eq.s32.totalorder %s27, 0
      %p132 = por %p130, %p131
      %s134 = sadd.s32 %s133, 1
      %p137 = scmp.eq.s32.totalorder %s21, 1
      %p138 = scmp.ne.s32.totalorder %s133, %s135
      %p139 = scmp.eq.s32.totalorder %s21, 0
      %p140 = por %p138, %p139
      %p141 = scmp.ne.s32.totalorder %s133, %s135
      %p142 = scmp.eq.s32.totalorder %s26, 1
      %p143 = por %p141, %p142
      %p144 = scmp.ne.s32.totalorder %s135, %s136
      %p145 = scmp.eq.s32.totalorder %s26, 0
      %p146 = por %p144, %p145
      %p147 = scmp.ne.s32.totalorder %s135, %s136
      %p148 = scmp.eq.s32.totalorder %s27, 1
      %p149 = por %p147, %p148
      %p151 = scmp.ne.s32.totalorder %s136, %s150
      %p152 = scmp.eq.s32.totalorder %s27, 0
      %p153 = por %p151, %p152
      %s155 = sadd.s32 %s154, 1
      %p158 = scmp.eq.s32.totalorder %s21, 1
      %p159 = scmp.ne.s32.totalorder %s154, %s156
      %p160 = scmp.eq.s32.totalorder %s21, 0
      %p161 = por %p159, %p160
      %p162 = scmp.ne.s32.totalorder %s154, %s156
      %p163 = scmp.eq.s32.totalorder %s26, 1
      %p164 = por %p162, %p163
      %p165 = scmp.ne.s32.totalorder %s156, %s157
      %p166 = scmp.eq.s32.totalorder %s26, 0
      %p167 = por %p165, %p166
      %p168 = scmp.ne.s32.totalorder %s156, %s157
      %p169 = scmp.eq.s32.totalorder %s27, 1
      %p170 = por %p168, %p169
      %p172 = scmp.ne.s32.totalorder %s157, %s171
      %p173 = scmp.eq.s32.totalorder %s27, 0
      %p174 = por %p172, %p173
      %s175 = ssub.s32 %s21, %s28
      %p176 = scmp.eq.s32.totalorder %s175, 0
      %s178 = sadd.s32 %s177, 1
      %s179 = scalar_select %p176, %s177, %s178
      %p182 = pneg %p176
      %p183 = scmp.eq.s32.totalorder %s21, 1
      %p184 = por %p182, %p183
      %p185 = scmp.ne.s32.totalorder %s177, %s180
      %p186 = scmp.eq.s32.totalorder %s21, 0
      %p187 = por %p185, %p186
      %p188 = scmp.ne.s32.totalorder %s177, %s180
      %p189 = scmp.eq.s32.totalorder %s26, 1
      %p190 = por %p188, %p189
      %p191 = scmp.ne.s32.totalorder %s180, %s181
      %p192 = scmp.eq.s32.totalorder %s26, 0
      %p193 = por %p191, %p192
      %p194 = scmp.ne.s32.totalorder %s180, %s181
      %p195 = scmp.eq.s32.totalorder %s27, 1
      %p196 = por %p194, %p195
      %p198 = scmp.ne.s32.totalorder %s181, %s197
      %p199 = scmp.eq.s32.totalorder %s27, 0
      %p200 = por %p198, %p199
      %p201 = scmp.le.s32.totalorder 1, %s21
      %p202 = scmp.lt.s32.totalorder %s21, 3
      %p203 = pnand %p201, %p202
      %p204 = pneg %p203
      // Predicated region
      $region9: #{tpu_custom_call.1} parent=5 // pred_check
        _
      $region10: #{tpu_custom_call.1} parent=5 // pred_check_branch
        %206 = sbr.rel (%p203) target = $region12
      $region11: #{tpu_custom_call.1} parent=5 // pred_region
        %s207 = ssub.s32 %s21, 1
        // Predicated region
        $region13: #{tpu_custom_call.1} parent=11 // pred_check
          %p208 = pneg %p146
        $region14: #{tpu_custom_call.1} parent=11 // pred_check_branch
          %210 = sbr.rel (%p208) target = $region16
        $region15: #{tpu_custom_call.1} parent=11 // pred_region
          _
        $region16: #{tpu_custom_call.1} parent=11 // pred_fallthru
          _
        // Predicated region
        $region17: #{tpu_custom_call.1} parent=11 // pred_check
          %p211 = pneg %p167
        $region18: #{tpu_custom_call.1} parent=11 // pred_check_branch
          %213 = sbr.rel (%p211) target = $region20
        $region19: #{tpu_custom_call.1} parent=11 // pred_region
          _
        $region20: #{tpu_custom_call.1} parent=11 // pred_fallthru
          _
      $region12: #{tpu_custom_call.1} parent=5 // pred_fallthru
        _
      %p214 = scmp.lt.s32.totalorder %s21, 2
      // Predicated region
      $region21: #{tpu_custom_call.1} parent=5 // pred_check
        %p215 = pneg %p214
      $region22: #{tpu_custom_call.1} parent=5 // pred_check_branch
        %217 = sbr.rel (%p215) target = $region24
      $region23: #{tpu_custom_call.1} parent=5 // pred_region
        // Predicated region
        $region25: #{tpu_custom_call.1} parent=23 // pred_check
          %p218 = pneg %p41
        $region26: #{tpu_custom_call.1} parent=23 // pred_check_branch
          %220 = sbr.rel (%p218) target = $region28
        $region27: #{tpu_custom_call.1} parent=23 // pred_region
          %s221 = sand.u32 %s31, 1
          %s222 = scalar_lea.sflag [#allocation3], %s221
          %s223 = sand.u32 %s31, 1
          %s224 = smul.addr %s223, 4
          %s225 = scalar_lea.vmem [#allocation2], %s224
          %s227 = ssub.s32 64, 64
          %228 = vsyncadd %s222, %s227
          %s229 = smul.addr %s21, 64
          %s230 = scalar_lea.hbm %s0, %s229
          %s232 = sshll.u32 %s225, 4
          %s233 = int_to_ptr.vmem [resolvable:$true] %s232
          %235 = dma.hbm_to_vmem [thread:$0]  %s230, 64, %s233, %s222
        $region28: #{tpu_custom_call.1} parent=23 // pred_fallthru
          _
        // Predicated region
        $region29: #{tpu_custom_call.1} parent=23 // pred_check
          %p236 = pneg %p67
        $region30: #{tpu_custom_call.1} parent=23 // pred_check_branch
          %238 = sbr.rel (%p236) target = $region32
        $region31: #{tpu_custom_call.1} parent=23 // pred_region
          %s239 = sand.u32 %s21, 1
          %s240 = scalar_lea.sflag [#allocation6], %s239
          %s241 = sand.u32 %s57, 1
          %s242 = smul.addr %s241, 4
          %s243 = scalar_lea.vmem [#allocation5], %s242
          %s245 = ssub.s32 64, 64
          %246 = vsyncadd %s240, %s245
          %s247 = smul.addr %s21, 64
          %s248 = scalar_lea.hbm %s1, %s247
          %s250 = sshll.u32 %s243, 4
          %s251 = int_to_ptr.vmem [resolvable:$true] %s250
          %253 = dma.hbm_to_vmem [thread:$0]  %s248, 64, %s251, %s240
        $region32: #{tpu_custom_call.1} parent=23 // pred_fallthru
          _
        // Predicated region
        $region33: #{tpu_custom_call.1} parent=23 // pred_check
          %p254 = pneg %p93
        $region34: #{tpu_custom_call.1} parent=23 // pred_check_branch
          %256 = sbr.rel (%p254) target = $region36
        $region35: #{tpu_custom_call.1} parent=23 // pred_region
          %s257 = sand.u32 %s21, 1
          %s258 = scalar_lea.sflag [#allocation6], %s257
          %s259 = sand.u32 %s83, 1
          %s260 = smul.addr %s259, 4
          %s261 = scalar_lea.vmem [#allocation7], %s260
          %s263 = ssub.s32 64, 64
          %264 = vsyncadd %s258, %s263
          %s265 = smul.addr %s21, 64
          %s266 = scalar_lea.hbm %s2, %s265
          %s268 = sshll.u32 %s261, 4
          %s269 = int_to_ptr.vmem [resolvable:$true] %s268
          %271 = dma.hbm_to_vmem [thread:$0]  %s266, 64, %s269, %s258
        $region36: #{tpu_custom_call.1} parent=23 // pred_fallthru
          _
        // Predicated region
        $region37: #{tpu_custom_call.1} parent=23 // pred_check
          %p272 = pneg %p119
        $region38: #{tpu_custom_call.1} parent=23 // pred_check_branch
          %274 = sbr.rel (%p272) target = $region40
        $region39: #{tpu_custom_call.1} parent=23 // pred_region
          %p275 = scmp.lt.s32.totalorder %s21, 1
          %s276 = scalar_select %p275, %s21, 1
          %s277 = scalar_lea.vmem %s3, %s276
        $region40: #{tpu_custom_call.1} parent=23 // pred_fallthru
          _
      $region24: #{tpu_custom_call.1} parent=5 // pred_fallthru
        _
      %p278 = scmp.le.s32.totalorder 1, %s21
      %p279 = scmp.lt.s32.totalorder %s21, 3
      %p280 = pnand %p278, %p279
      %p281 = pneg %p280
      // Predicated region
      $region41: #{tpu_custom_call.1} parent=5 // pred_check
        _
      $region42: #{tpu_custom_call.1} parent=5 // pred_check_branch
        %283 = sbr.rel (%p280) target = $region44
      $region43: #{tpu_custom_call.1} parent=5 // pred_region
        %s284 = ssub.s32 %s21, 1
        %s285 = sand.u32 %s34, 1
        %s286 = scalar_lea.sflag [#allocation3], %s285
        %s287 = sand.u32 %s34, 1
        %s288 = smul.addr %s287, 4
        %s289 = scalar_lea.vmem [#allocation2], %s288
        // Predicated region
        $region45: #{tpu_custom_call.1} parent=43 // pred_check
          %p290 = pneg %p47
        $region46: #{tpu_custom_call.1} parent=43 // pred_check_branch
          %292 = sbr.rel (%p290) target = $region48
        $region47: #{tpu_custom_call.1} parent=43 // pred_region
          %293 = dma.done %s286, 64
        $region48: #{tpu_custom_call.1} parent=43 // pred_fallthru
          _
        %s294 = sand.u32 %s26, 1
        %s295 = scalar_lea.sflag [#allocation6], %s294
        %s296 = sand.u32 %s60, 1
        %s297 = smul.addr %s296, 4
        %s298 = scalar_lea.vmem [#allocation5], %s297
        // Predicated region
        $region49: #{tpu_custom_call.1} parent=43 // pred_check
          %p299 = pneg %p73
        $region50: #{tpu_custom_call.1} parent=43 // pred_check_branch
          %301 = sbr.rel (%p299) target = $region52
        $region51: #{tpu_custom_call.1} parent=43 // pred_region
          %302 = dma.done %s295, 64
        $region52: #{tpu_custom_call.1} parent=43 // pred_fallthru
          _
        %s303 = sand.u32 %s26, 1
        %s304 = scalar_lea.sflag [#allocation6], %s303
        %s305 = sand.u32 %s86, 1
        %s306 = smul.addr %s305, 4
        %s307 = scalar_lea.vmem [#allocation7], %s306
        // Predicated region
        $region53: #{tpu_custom_call.1} parent=43 // pred_check
          %p308 = pneg %p99
        $region54: #{tpu_custom_call.1} parent=43 // pred_check_branch
          %310 = sbr.rel (%p308) target = $region56
        $region55: #{tpu_custom_call.1} parent=43 // pred_region
          %311 = dma.done %s304, 64
        $region56: #{tpu_custom_call.1} parent=43 // pred_fallthru
          _
        %s312 = sand.u32 %s34, 1
        %s313 = scalar_lea.sflag [#allocation3], %s312
        %s314 = sand.u32 %s34, 1
        %s315 = smul.addr %s314, 4
        %s316 = scalar_lea.vmem [#allocation2], %s315
        %p317 = pneg %p47
        %p318 = pneg %p44
        %s319 = sand.u32 %s26, 1
        %s320 = scalar_lea.sflag [#allocation6], %s319
        %s321 = sand.u32 %s60, 1
        %s322 = smul.addr %s321, 4
        %s323 = scalar_lea.vmem [#allocation5], %s322
        %p324 = pneg %p73
        %p325 = pneg %p70
        %s326 = sand.u32 %s26, 1
        %s327 = scalar_lea.sflag [#allocation6], %s326
        %s328 = sand.u32 %s86, 1
        %s329 = smul.addr %s328, 4
        %s330 = scalar_lea.vmem [#allocation7], %s329
        %p331 = pneg %p99
        %p332 = pneg %p96
        %p333 = scmp.lt.s32.totalorder %s26, 1
        %s334 = scalar_select %p333, %s26, 1
        %s335 = scalar_lea.vmem %s3, %s334
        %p336 = pneg %p125
        %p337 = pneg %p122
        %p338 = pneg %p146
        %p339 = pneg %p143
        %p340 = pneg %p167
        %p341 = pneg %p164
        %p342 = pneg %p193
        %p343 = pneg %p190
        %s344 = sand.u32 %s180, 1
        %s345 = scalar_lea.sflag [#allocation4], %s344
        %s346 = sand.u32 %s180, 1
        %s347 = smul.addr %s346, 8
        %s348 = scalar_lea.vmem [#allocation8], %s347
        %p349 = scmp.lt.s32.totalorder %s26, 1
        %s350 = scalar_select %p349, %s26, 1
        %s351 = scalar_lea.vmem %s3, %s350
        %v353 = vld [vmem:[%s289] sm:$0xf]
        %v354 = vunpack.c.l.bf16 %v353
        %v355 = vld [vmem:[%s298] sm:$0xf]
        %v356 = vunpack.c.l.bf16 %v355
        %v357 = vld [vmem:[%s4] sm:$0x1]
        %v358 = vld [vmem:[%s5] sm:$0x1]
        %v360 = vlaneseq
        %v361 = vshrl.u32 %v360, 7
        %v362 = vsub.s32 0, %v361
        %v363 = vrot.slane %v357, %v362
        %v365 = vmul.f32 %v354, %v363
        %vm366 = vcmask 261120
        %v367 = vsel %vm366, %v365, 0.0
        %368 = vadd.xlane.f32.xlu0 %v367
        %v369 = vpop.xlane.xlu0 %368
        %v371 = vlaneseq
        %v372 = vshrl.u32 %v371, 7
        %v373 = vsub.s32 0, %v372
        %v374 = vrot.slane %v358, %v373
        %v376 = vmul.f32 %v356, %v374
        %v377 = vsel %vm366, %v376, 0.0
        %378 = vadd.xlane.f32.xlu0 %v377
        %v379 = vpop.xlane.xlu0 %378
        %380 = vxpose.xlu0.b32.start [1/16] %v379, 128
        %381 = vxpose.xlu0.b32.cont [2/16] 0.0, 128
        %382 = vxpose.xlu0.b32.cont [3/16] 0.0, 128
        %383 = vxpose.xlu0.b32.cont [4/16] 0.0, 128
        %384 = vxpose.xlu0.b32.cont [5/16] 0.0, 128
        %385 = vxpose.xlu0.b32.cont [6/16] 0.0, 128
        %386 = vxpose.xlu0.b32.cont [7/16] 0.0, 128
        %387 = vxpose.xlu0.b32.cont [8/16] 0.0, 128
        %388 = vxpose.xlu0.b32.cont [9/16] 0.0, 128
        %389 = vxpose.xlu0.b32.cont [10/16] 0.0, 128
        %390 = vxpose.xlu0.b32.cont [11/16] 0.0, 128
        %391 = vxpose.xlu0.b32.cont [12/16] 0.0, 128
        %392 = vxpose.xlu0.b32.cont [13/16] 0.0, 128
        %393 = vxpose.xlu0.b32.cont [14/16] 0.0, 128
        %394 = vxpose.xlu0.b32.cont [15/16] 0.0, 128
        %395 = vxpose.xlu0.b32.end [16/16] 0.0, 128
        %v396 = vpop.trf.xlu0
        %v397 = vpop.trf.xlu0
        %v398 = vpop.trf.xlu0
        %v399 = vpop.trf.xlu0
        %v400 = vpop.trf.xlu0
        %v401 = vpop.trf.xlu0
        %v402 = vpop.trf.xlu0
        %v403 = vpop.trf.xlu0
        %v404 = vpop.trf.xlu0
        %v405 = vpop.trf.xlu0
        %v406 = vpop.trf.xlu0
        %v407 = vpop.trf.xlu0
        %v408 = vpop.trf.xlu0
        %v409 = vpop.trf.xlu0
        %v410 = vpop.trf.xlu0
        %v411 = vpop.trf.xlu0
        %v412 = vlaneseq
        %v413 = vshrl.u32 %v412, 7
        %v414 = vsub.s32 0, %v413
        %v415 = vrot.slane %v396, %v414
        %v416 = vadd.f32 %v369, %v415
        %v417 = vld [vmem:[%s351] sm:$0x1]
        %v418 = vlaneseq
        %v419 = vand.u32 %v418, 127
        %420 = vset.pattern.permute.xlu0 0
        %421 = vperm.xlu0 %420, %v417
        %v422 = vpop.permute.xlu0 %421
        %v423 = vlaneseq
        %v424 = vshrl.u32 %v423, 7
        %v425 = vsub.s32 0, %v424
        %v426 = vrot.slane %v422, %v425
        %vm427 = vcmp.ge.s32.totalorder %v419, %v426
        %v428 = vsel %vm427, 1, 0
        %vm429 = vcmp.eq.s32.totalorder %v428, 1
        %v430 = vsel %vm429, -1000000.0, %v416
        %vm431 = vcmask 64512
        %v432 = vsel %vm431, %v430, -inf
        %433 = vmax.xlane.f32.xlu0 %v432
        %v434 = vpop.xlane.xlu0 %433
        %v435 = vsub.f32 %v430, %v434
        %v436 = vmul.f32 %v435, 1.442695
        %v437 = vpow.pop %v436
        %v438 = vsel %vm431, %v437, 0.0
        %439 = vadd.xlane.f32.xlu0 %v438
        %v440 = vpop.xlane.xlu0 %439
        %v441 = vrcp.pop %v440
        %v442 = vmul.f32 %v437, %v441
        %v443 = vpack.c.bf16 %v442, %v442
        %v444 = vld [vmem:[%s307] sm:$0xf]
        %v446 = vsel %vm431, %v443, 0
        %vm448 = vcmask 1043456
        %v450 = vsel %vm448, %v444, 0
        %452 = vmatprep.subr.bf16.mxu0 0
        %453 = vmatpush1.bf16.msra.mxu0 0
        %454 = vmatprep.subr.bf16.mxu0 0
        %455 = vmatpush1.bf16.msra.mxu0 0
        %456 = vmatprep.subr.bf16.mxu0 0
        %457 = vmatpush1.bf16.msra.mxu0 0
        %458 = vmatprep.subr.bf16.mxu0 0
        %459 = vmatpush1.bf16.msra.mxu0 0
        %460 = vmatprep.subr.bf16.mxu0 0
        %461 = vmatpush1.bf16.msra.mxu0 0
        %462 = vmatprep.subr.bf16.mxu0 0
        %463 = vmatpush1.bf16.msra.mxu0 0
        %464 = vmatprep.subr.bf16.mxu0 0
        %465 = vmatpush1.bf16.msra.mxu0 0
        %466 = vmatprep.subr.bf16.mxu0 0
        %467 = vmatpush1.bf16.msra.mxu0 %v450
        %468 = vmatprep.subr.bf16.mxu0 0
        %469 = vmatpush2.bf16.msra.mxu0 0
        %470 = vmatprep.subr.bf16.mxu0 0
        %471 = vmatpush2.bf16.msra.mxu0 0
        %472 = vmatprep.subr.bf16.mxu0 0
        %473 = vmatpush2.bf16.msra.mxu0 0
        %474 = vmatprep.subr.bf16.mxu0 0
        %475 = vmatpush2.bf16.msra.mxu0 0
        %476 = vmatprep.subr.bf16.mxu0 0
        %477 = vmatpush2.bf16.msra.mxu0 0
        %478 = vmatprep.subr.bf16.mxu0 0
        %479 = vmatpush2.bf16.msra.mxu0 0
        %480 = vmatprep.subr.bf16.mxu0 0
        %481 = vmatpush2.bf16.msra.mxu0 0
        %482 = vmatprep.subr.bf16.mxu0 0
        %483 = vmatpush2.bf16.msra.mxu0 0
        %484 = vmatprep.mubr.bf16.mxu0 0
        %485 = vmatmul.mubr.bf16.gmra.mxu0 %v446
        %v486 = vpop.f32.mrf.mxu0
        %v487 = vadd.f32 0.0, %v486
        %v488 = vpop.f32.mrf.mxu0
        %v489 = vpop.f32.mrf.mxu0
        %v490 = vpop.f32.mrf.mxu0
        %491 = vdwg.mxu0
        %vm492 = vcmask 130048
        %493 = vst.msk [vmem:[%s348] sm:$0xff] %vm492, %v487
        %s494 = sand.u32 %s180, 1
        %s495 = scalar_lea.sflag [#allocation4], %s494
        %s496 = sand.u32 %s180, 1
        %s497 = smul.addr %s496, 8
        %s498 = scalar_lea.vmem [#allocation8], %s497
        // Predicated region
        $region57: #{tpu_custom_call.1} parent=43 // pred_check
          %p499 = pneg %p190
        $region58: #{tpu_custom_call.1} parent=43 // pred_check_branch
          %501 = sbr.rel (%p499) target = $region60
        $region59: #{tpu_custom_call.1} parent=43 // pred_region
          %s503 = ssub.s32 128, 128
          %504 = vsyncadd %s495, %s503
          %s505 = smul.addr %s26, 128
          %s506 = scalar_lea.hbm %s6, %s505
          %s508 = sshll.u32 %s498, 4
          %s509 = int_to_ptr.vmem [resolvable:$true] %s508
          %511 = dma.vmem_to_hbm [thread:$0]  %s509, 128, %s506, %s495
        $region60: #{tpu_custom_call.1} parent=43 // pred_fallthru
          _
      $region44: #{tpu_custom_call.1} parent=5 // pred_fallthru
        _
      %p512 = scmp.le.s32.totalorder 2, %s21
      // Predicated region
      $region61: #{tpu_custom_call.1} parent=5 // pred_check
        %p513 = pneg %p512
      $region62: #{tpu_custom_call.1} parent=5 // pred_check_branch
        %515 = sbr.rel (%p513) target = $region64
      $region63: #{tpu_custom_call.1} parent=5 // pred_region
        %s516 = ssub.s32 %s21, 2
        // Predicated region
        $region65: #{tpu_custom_call.1} parent=63 // pred_check
          %p517 = pneg %p196
        $region66: #{tpu_custom_call.1} parent=63 // pred_check_branch
          %519 = sbr.rel (%p517) target = $region68
        $region67: #{tpu_custom_call.1} parent=63 // pred_region
          %s520 = sand.u32 %s181, 1
          %s521 = scalar_lea.sflag [#allocation4], %s520
          %s522 = sand.u32 %s181, 1
          %s523 = smul.addr %s522, 8
          %s524 = scalar_lea.vmem [#allocation8], %s523
          %525 = dma.done %s521, 128
        $region68: #{tpu_custom_call.1} parent=63 // pred_fallthru
          _
      $region64: #{tpu_custom_call.1} parent=5 // pred_fallthru
        _
    $region6: #{tpu_custom_call.1} parent=1 // loop_footer
      %s25 = sadd.s32 1, %s21
    $region7: #{tpu_custom_call.1} parent=1 // loop_footer_branch
      %20 = sbr.rel target = $region3
    $region8: #{tpu_custom_call.1} parent=1 // loop_exit
      _
    %526 = vsyncpa [#allocation3], 1
    %s527 = scalar_lea.sflag [#allocation3], 1
    %528 = vsyncpa %s527, 1
    %529 = vsyncpa [#allocation6], 1
    %s530 = scalar_lea.sflag [#allocation6], 1
    %531 = vsyncpa %s530, 1
    %532 = vsyncpa [#allocation4], 1
    %s533 = scalar_lea.sflag [#allocation4], 1
    %534 = vsyncpa %s533, 1

</llo_original>
